<compile_context>
chip_gen: v6e
topology: v6e:2x2x1
jax: 0.10.0
libtpu: 0.0.40
codegen_flags: <defaults>
</compile_context>

<pallas_src>
import jax
import jax.numpy as jnp
from jax.experimental import pallas as pl
from jax.experimental.pallas import tpu as pltpu


TARGET_BLOCK_BYTES = 4 * 1024 * 1024   # ~4 MiB per stream per grid step
VMEM_LIMIT_BYTES = 48 << 20            # explicit scoped-VMEM allowance (all gens)


def _sublane_granule(dtype) -> int:
    nbytes = jnp.dtype(dtype).itemsize
    if nbytes >= 4:
        return 8
    if nbytes == 2:
        return 16
    return 32


def _dc_kernel(w_ref, pred_ref, ref_ref, mask_ref, out_ref):
    """Elementwise: out = where(mask != 0, pred - ref, 0) * dc_weight."""
    w = w_ref[0]                                   # scalar dc_weight (SMEM, f32)
    diff = pred_ref[...] - ref_ref[...]
    keep = mask_ref[...] != 0.0                    # f32 compare == mask.bool()
    # keep is (1, tile_r, C) on the shared-mask path; broadcasts over bc_blk.
    out_ref[...] = (jnp.where(keep, diff, 0.0) * w).astype(out_ref.dtype)


def data_consistency_layer(pred_kspace, ref_kspace, mask, dc_weight):
    """JAX/Pallas equivalent of DataConsistencyLayer.forward.

    pred_kspace, ref_kspace : [B, C, H, W, 2]
    mask                    : broadcastable to pred_kspace (typically [1,1,H,W,1])
    dc_weight               : shape (1,) parameter
    """
    orig_shape = pred_kspace.shape
    dtype = pred_kspace.dtype
    dbytes = jnp.dtype(dtype).itemsize
    *lead, H, W, two = orig_shape
    BC = 1
    for s in lead:
        BC *= s
    W2 = W * two
    HW2 = H * W2

    # ---- layout: free reshapes only, never pad -----------------------------
    if HW2 % 128 == 0:
        C = 128                 # lane-dense view -> unmasked full-lane stores
        R = HW2 // 128
    else:
        C = W2                  # full last dim -> no 128-divisibility needed
        R = H

    pred3 = pred_kspace.reshape(BC, R, C)
    ref3 = ref_kspace.reshape(BC, R, C)

    # ---- mask handling ------------------------------------------------------
    # Shared mask (all leading dims 1): keep a single (1, R, C) float32 copy;
    # its BlockSpec index_map ignores the BC grid axis, so after the first
    # fetch of each row tile the mask DMA is skipped on every revisit.
    mask_shared = (mask.ndim == pred_kspace.ndim
                   and all(int(m) == 1 for m in mask.shape[:len(lead)]))
    if mask_shared:
        mask3 = jnp.broadcast_to(
            mask.reshape(mask.shape[len(lead):]), (H, W, two)
        ).astype(jnp.float32).reshape(1, R, C)
    else:
        # Rare fallback: per-(b, c) mask — streamed like pred/ref.
        # TODO(synk): could express partial broadcasts via index_map instead.
        mask3 = jnp.broadcast_to(mask, orig_shape).astype(jnp.float32).reshape(BC, R, C)

    # ---- tiling (no padding; ragged edge blocks handled by Pallas) ---------
    granule = _sublane_granule(dtype)
    per_row_f32 = C * 4                      # bounds the f32 mask block too
    rows_fit = max(granule,
                   (TARGET_BLOCK_BYTES // per_row_f32) // granule * granule)
    if rows_fit >= R:
        tile_r = R                           # full dim -> granule rule waived
        num_r = 1
        bc_blk = int(min(BC, max(1, TARGET_BLOCK_BYTES // max(1, R * C * dbytes))))
    else:
        tile_r = int(rows_fit)               # multiple of the dtype granule
        num_r = pl.cdiv(R, tile_r)
        bc_blk = 1

    # Grid: (row tiles, B*C tiles); B*C iterates fastest so the mask block
    # index (which ignores it) is revisited and its DMA is skipped.
    grid = (num_r, pl.cdiv(BC, bc_blk))

    data_spec = pl.BlockSpec((bc_blk, tile_r, C), lambda i, j, w: (j, i, 0))
    if mask_shared:
        mask_spec = pl.BlockSpec((1, tile_r, C), lambda i, j, w: (0, i, 0))
    else:
        mask_spec = data_spec

    w_arr = jnp.asarray(dc_weight, jnp.float32).reshape(1)

    out3 = pl.pallas_call(
        _dc_kernel,
        out_shape=jax.ShapeDtypeStruct((BC, R, C), dtype),
        grid_spec=pltpu.PrefetchScalarGridSpec(
            num_scalar_prefetch=1,            # dc_weight lives in SMEM
            grid=grid,
            in_specs=[data_spec, data_spec, mask_spec],
            out_specs=data_spec,
        ),
        compiler_params=pltpu.CompilerParams(
            dimension_semantics=("parallel", "parallel"),
            vmem_limit_bytes=VMEM_LIMIT_BYTES),
    )(w_arr, pred3, ref3, mask3)

    return out3.reshape(orig_shape)


if __name__ == "__main__":
    # Small shapes consistent with the module's k-space convention.
    B, C, H, W = 2, 4, 16, 16
    key = jax.random.PRNGKey(0)
    k1, k2, k3 = jax.random.split(key, 3)

    pred_kspace = jax.random.normal(k1, (B, C, H, W, 2), dtype=jnp.float32)
    ref_kspace = jax.random.normal(k2, (B, C, H, W, 2), dtype=jnp.float32)
    # Undersampling mask along W, broadcast over B, C, H and complex dim.
    mask = (jax.random.uniform(k3, (1, 1, H, W, 1)) > 0.5).astype(jnp.float32)

    # Deterministic parameter init matching torch.nn.Parameter(torch.ones(1)).
    dc_weight = jnp.ones((1,), dtype=jnp.float32)

    out = data_consistency_layer(pred_kspace, ref_kspace, mask, dc_weight)
    out = jax.block_until_ready(out)

    # Pure-JAX reference check.
    ref_out = jnp.where(mask.astype(bool), pred_kspace - ref_kspace,
                        jnp.zeros((1, 1, 1, 1, 1), jnp.float32)) * dc_weight
    assert out.shape == pred_kspace.shape
    assert jnp.allclose(out, ref_out, atol=1e-6), "mismatch vs reference"

    print("KERNEL_OK")
</pallas_src>

<mosaic_0001>
module attributes {stable_mosaic.version = 11 : i64} {
  func.func @_dc_kernel(%arg0: i32, %arg1: i32, %arg2: memref<1xf32, #tpu.memory_space<smem>>, %arg3: memref<8x4x128xf32, #tpu.memory_space<vmem>>, %arg4: memref<8x4x128xf32, #tpu.memory_space<vmem>>, %arg5: memref<1x4x128xf32, #tpu.memory_space<vmem>>, %arg6: memref<8x4x128xf32, #tpu.memory_space<vmem>>) attributes {dimension_semantics = [#tpu.dimension_semantics<parallel>, #tpu.dimension_semantics<parallel>], iteration_bounds = array<i64: 1, 1>, scalar_prefetch = 1 : i64, scratch_operands = 0 : i64, tpu.core_type = #tpu.core_type<tc>, window_params = [{transform_indices = @transform_0, window_bounds = array<i64: 8, 4, 128>}, {transform_indices = @transform_1, window_bounds = array<i64: 8, 4, 128>}, {transform_indices = @transform_2, window_bounds = array<i64: 1, 4, 128>}, {transform_indices = @transform_3, window_bounds = array<i64: 8, 4, 128>}]} {
    %c0 = arith.constant 0 : index
    %0 = memref.load %arg2[%c0] : memref<1xf32, #tpu.memory_space<smem>>
    %c0_0 = arith.constant 0 : index
    %c0_1 = arith.constant 0 : index
    %c0_2 = arith.constant 0 : index
    %1 = vector.load %arg3[%c0_0, %c0_1, %c0_2] : memref<8x4x128xf32, #tpu.memory_space<vmem>>, vector<8x4x128xf32>
    %c0_3 = arith.constant 0 : index
    %c0_4 = arith.constant 0 : index
    %c0_5 = arith.constant 0 : index
    %2 = vector.load %arg4[%c0_3, %c0_4, %c0_5] : memref<8x4x128xf32, #tpu.memory_space<vmem>>, vector<8x4x128xf32>
    %3 = arith.subf %1, %2 : vector<8x4x128xf32>
    %c0_6 = arith.constant 0 : index
    %c0_7 = arith.constant 0 : index
    %c0_8 = arith.constant 0 : index
    %4 = vector.load %arg5[%c0_6, %c0_7, %c0_8] : memref<1x4x128xf32, #tpu.memory_space<vmem>>, vector<1x4x128xf32>
    %cst = arith.constant 0.000000e+00 : f32
    %5 = vector.broadcast %cst : f32 to vector<1x4x128xf32>
    %6 = arith.cmpf one, %4, %5 : vector<1x4x128xf32>
    %cst_9 = arith.constant 0.000000e+00 : f32
    %7 = vector.shape_cast %6 : vector<1x4x128xi1> to vector<1x4x128xi1>
    %8 = vector.broadcast %7 : vector<1x4x128xi1> to vector<8x4x128xi1>
    %9 = vector.broadcast %cst_9 : f32 to vector<8x4x128xf32>
    %10 = arith.select %8, %3, %9 : vector<8x4x128xi1>, vector<8x4x128xf32>
    %11 = vector.broadcast %0 : f32 to vector<8x4x128xf32>
    %12 = arith.mulf %10, %11 : vector<8x4x128xf32>
    %c0_10 = arith.constant 0 : index
    %c0_11 = arith.constant 0 : index
    %c0_12 = arith.constant 0 : index
    %13 = vector.load %arg6[%c0_10, %c0_11, %c0_12] : memref<8x4x128xf32, #tpu.memory_space<vmem>>, vector<8x4x128xf32>
    tpu.vector_store %arg6[%c0_10, %c0_11, %c0_12], %12 {strides = array<i32>} : memref<8x4x128xf32, #tpu.memory_space<vmem>>, vector<8x4x128xf32>,
    return
  }
  func.func @transform_0(%arg0: i32, %arg1: i32, %arg2: memref<1xf32, #tpu.memory_space<smem>>) -> (i32, i32, i32) {
    %c0_i32 = arith.constant 0 : i32
    %c0_i32_0 = arith.constant 0 : i32
    return %arg1, %arg0, %c0_i32 : i32, i32, i32
  }
  func.func @transform_1(%arg0: i32, %arg1: i32, %arg2: memref<1xf32, #tpu.memory_space<smem>>) -> (i32, i32, i32) {
    %c0_i32 = arith.constant 0 : i32
    %c0_i32_0 = arith.constant 0 : i32
    return %arg1, %arg0, %c0_i32 : i32, i32, i32
  }
  func.func @transform_2(%arg0: i32, %arg1: i32, %arg2: memref<1xf32, #tpu.memory_space<smem>>) -> (i32, i32, i32) {
    %c0_i32 = arith.constant 0 : i32
    %c0_i32_0 = arith.constant 0 : i32
    %c0_i32_1 = arith.constant 0 : i32
    return %c0_i32, %arg0, %c0_i32_0 : i32, i32, i32
  }
  func.func @transform_3(%arg0: i32, %arg1: i32, %arg2: memref<1xf32, #tpu.memory_space<smem>>) -> (i32, i32, i32) {
    %c0_i32 = arith.constant 0 : i32
    %c0_i32_0 = arith.constant 0 : i32
    return %arg1, %arg0, %c0_i32 : i32, i32, i32
  }
}

</mosaic_0001>

<llo_original>
// kernel: tpu_custom_call.1
$region0: #{tpu_custom_call.1}
  #allocation0 [shape = 'u32[]', space=smem, size = 0x4, offset = 0x4, fixed_abs, tag = 'smem constant byte address 0x4 - core index']
  #allocation1 [shape = 'u32[144,128]{1,0:T(1,128)}', space=vmem, size = 0x12000, scoped, tag = 'internal scratch']
  #allocation2 [shape = 's32[1]{0}', space=sflag, size = 0x4, scoped, tag = 'scoped memory for tpu_custom_call.1']
  #allocation3 [shape = 'f32[1]{0:T(128)S(6)}', space=smem, size = 0x200, scoped, tag = 'prefetched SMEM operand 0']
  %s0 = inlined_call_operand.<no memory space> [shape: f32[1], index: 0, kind: input, shape index: {}]
  %s1 = inlined_call_operand.hbm [shape: f32[8,4,128], index: 1, kind: input, shape index: {}]
  %s2 = inlined_call_operand.hbm [shape: f32[8,4,128], index: 2, kind: input, shape index: {}]
  %s3 = inlined_call_operand.vmem [shape: f32[1,4,128], index: 3, kind: input, shape index: {}]
  %s4 = inlined_call_operand.hbm [shape: f32[8,4,128], index: 4, kind: output, shape index: {}]
  %s5 = sld [smem:[#allocation0]]
  $region30: #{tpu_custom_call.1} parent=0
    _
  %s7 = ssub.s32 1, %s5
  %s8 = scalar_select 0, %s7, %s5
  %9 = sst [smem:[#allocation3]] %s0
  $region1: #{tpu_custom_call.1} parent=0
    #allocation4 [shape = 'u8[16384]{0}', space=vmem, size = 0x4000, scoped, tag = 'input window, operand 1, single buffered']
    #allocation5 [shape = 's32[1]{0}', space=sflag, size = 0x4, scoped, tag = 'scoped memory for tpu_custom_call.1']
    #allocation6 [shape = 's32[1]{0}', space=sflag, size = 0x4, scoped, tag = 'scoped memory for tpu_custom_call.1']
    #allocation7 [shape = 'u8[16384]{0}', space=vmem, size = 0x4000, scoped, tag = 'input window, operand 2, single buffered']
    #allocation8 [shape = 's32[1]{0}', space=sflag, size = 0x4, scoped, tag = 'scoped memory for tpu_custom_call.1']
    #allocation9 [shape = 'u8[16384]{0}', space=vmem, size = 0x4000, scoped, tag = 'output window, operand 0, single buffered']
    %10 = vsyncpa [#allocation5], 0
    %11 = vsyncpa [#allocation8], 0
    %12 = vsyncpa [#allocation6], 0
    // Predicated region
    $region2: #{tpu_custom_call.1} parent=1 // pred_check
      _
    $region3: #{tpu_custom_call.1} parent=1 // pred_check_branch
      %14 = sbr.rel (0) target = $region5
    $region4: #{tpu_custom_call.1} parent=1 // pred_region
      %s16 = ssub.s32 512, 512
      %17 = vsyncadd [#allocation5], %s16
      %s18 = sshll.u32 [#allocation4], 4
      %s19 = int_to_ptr.vmem [resolvable:$true] %s18
      %24 = dma.hbm_to_vmem [thread:$0]  %s1, 512, %s19, [#allocation5], 64, 64, 4
    $region5: #{tpu_custom_call.1} parent=1 // pred_fallthru
      _
    // Predicated region
    $region6: #{tpu_custom_call.1} parent=1 // pred_check
      _
    $region7: #{tpu_custom_call.1} parent=1 // pred_check_branch
      %26 = sbr.rel (0) target = $region9
    $region8: #{tpu_custom_call.1} parent=1 // pred_region
      %s28 = ssub.s32 512, 512
      %29 = vsyncadd [#allocation8], %s28
      %s30 = sshll.u32 [#allocation7], 4
      %s31 = int_to_ptr.vmem [resolvable:$true] %s30
      %36 = dma.hbm_to_vmem [thread:$0]  %s2, 512, %s31, [#allocation8], 64, 64, 4
    $region9: #{tpu_custom_call.1} parent=1 // pred_fallthru
      _
    // Predicated region
    $region10: #{tpu_custom_call.1} parent=1 // pred_check
      _
    $region11: #{tpu_custom_call.1} parent=1 // pred_check_branch
      %38 = sbr.rel (0) target = $region13
    $region12: #{tpu_custom_call.1} parent=1 // pred_region
      _
    $region13: #{tpu_custom_call.1} parent=1 // pred_fallthru
      _
    // Predicated region
    $region14: #{tpu_custom_call.1} parent=1 // pred_check
      _
    $region15: #{tpu_custom_call.1} parent=1 // pred_check_branch
      %40 = sbr.rel (0) target = $region17
    $region16: #{tpu_custom_call.1} parent=1 // pred_region
      %41 = dma.done [#allocation5], 512
    $region17: #{tpu_custom_call.1} parent=1 // pred_fallthru
      _
    // Predicated region
    $region18: #{tpu_custom_call.1} parent=1 // pred_check
      _
    $region19: #{tpu_custom_call.1} parent=1 // pred_check_branch
      %43 = sbr.rel (0) target = $region21
    $region20: #{tpu_custom_call.1} parent=1 // pred_region
      %44 = dma.done [#allocation8], 512
    $region21: #{tpu_custom_call.1} parent=1 // pred_fallthru
      _
    %s45 = sld [smem:[#allocation3]]
    %v46 = vld [vmem:[#allocation4] sm:$0xf]
    %v47 = vld [vmem:[#allocation4 + $0x4] sm:$0xf]
    %v48 = vld [vmem:[#allocation4 + $0x8] sm:$0xf]
    %v49 = vld [vmem:[#allocation4 + $0xc] sm:$0xf]
    %v50 = vld [vmem:[#allocation4 + $0x10] sm:$0xf]
    %v51 = vld [vmem:[#allocation4 + $0x14] sm:$0xf]
    %v52 = vld [vmem:[#allocation4 + $0x18] sm:$0xf]
    %v53 = vld [vmem:[#allocation4 + $0x1c] sm:$0xf]
    %v54 = vld [vmem:[#allocation7] sm:$0xf]
    %v55 = vld [vmem:[#allocation7 + $0x4] sm:$0xf]
    %v56 = vld [vmem:[#allocation7 + $0x8] sm:$0xf]
    %v57 = vld [vmem:[#allocation7 + $0xc] sm:$0xf]
    %v58 = vld [vmem:[#allocation7 + $0x10] sm:$0xf]
    %v59 = vld [vmem:[#allocation7 + $0x14] sm:$0xf]
    %v60 = vld [vmem:[#allocation7 + $0x18] sm:$0xf]
    %v61 = vld [vmem:[#allocation7 + $0x1c] sm:$0xf]
    %v62 = vsub.f32 %v46, %v54
    %v63 = vsub.f32 %v47, %v55
    %v64 = vsub.f32 %v48, %v56
    %v65 = vsub.f32 %v49, %v57
    %v66 = vsub.f32 %v50, %v58
    %v67 = vsub.f32 %v51, %v59
    %v68 = vsub.f32 %v52, %v60
    %v69 = vsub.f32 %v53, %v61
    %v70 = vld [vmem:[%s3] sm:$0xf]
    %vm71 = vcmp.ne.f32.partialorder %v70, 0.0
    %v72 = vsel %vm71, 1, 0
    %vm73 = vcmp.eq.s32.totalorder %v72, 1
    %v74 = vsel %vm73, %v62, 0.0
    %v75 = vsel %vm73, %v63, 0.0
    %v76 = vsel %vm73, %v64, 0.0
    %v77 = vsel %vm73, %v65, 0.0
    %v78 = vsel %vm73, %v66, 0.0
    %v79 = vsel %vm73, %v67, 0.0
    %v80 = vsel %vm73, %v68, 0.0
    %v81 = vsel %vm73, %v69, 0.0
    %v82 = vstv %s45
    %v83 = vmul.f32 %v74, %v82
    %v84 = vmul.f32 %v75, %v82
    %v85 = vmul.f32 %v76, %v82
    %v86 = vmul.f32 %v77, %v82
    %v87 = vmul.f32 %v78, %v82
    %v88 = vmul.f32 %v79, %v82
    %v89 = vmul.f32 %v80, %v82
    %v90 = vmul.f32 %v81, %v82
    %91 = vst [vmem:[#allocation9] sm:$0xf] %v83
    %92 = vst [vmem:[#allocation9 + $0x4] sm:$0xf] %v84
    %93 = vst [vmem:[#allocation9 + $0x8] sm:$0xf] %v85
    %94 = vst [vmem:[#allocation9 + $0xc] sm:$0xf] %v86
    %95 = vst [vmem:[#allocation9 + $0x10] sm:$0xf] %v87
    %96 = vst [vmem:[#allocation9 + $0x14] sm:$0xf] %v88
    %97 = vst [vmem:[#allocation9 + $0x18] sm:$0xf] %v89
    %98 = vst [vmem:[#allocation9 + $0x1c] sm:$0xf] %v90
    // Predicated region
    $region22: #{tpu_custom_call.1} parent=1 // pred_check
      _
    $region23: #{tpu_custom_call.1} parent=1 // pred_check_branch
      %100 = sbr.rel (0) target = $region25
    $region24: #{tpu_custom_call.1} parent=1 // pred_region
      %s102 = ssub.s32 512, 512
      %103 = vsyncadd [#allocation6], %s102
      %s104 = sshll.u32 [#allocation9], 4
      %s105 = int_to_ptr.vmem [resolvable:$true] %s104
      %110 = dma.vmem_to_hbm [thread:$0]  %s105, 512, %s4, [#allocation6], 64, 64, 4
    $region25: #{tpu_custom_call.1} parent=1 // pred_fallthru
      _
    // Predicated region
    $region26: #{tpu_custom_call.1} parent=1 // pred_check
      _
    $region27: #{tpu_custom_call.1} parent=1 // pred_check_branch
      %112 = sbr.rel (0) target = $region29
    $region28: #{tpu_custom_call.1} parent=1 // pred_region
      %113 = dma.done [#allocation6], 512
    $region29: #{tpu_custom_call.1} parent=1 // pred_fallthru
      _
    %114 = vsyncpa [#allocation5], 1
    %115 = vsyncpa [#allocation8], 1
    %116 = vsyncpa [#allocation6], 1

</llo_original>
